<compile_context>
chip_gen: v7x
topology: tpu7x:2x2x1
jax: 0.10.0
libtpu: 0.0.40
codegen_flags: <defaults>
</compile_context>

<pallas_src>
import jax
import jax.numpy as jnp
from jax.experimental import pallas as pl
from jax.experimental.pallas import tpu as pltpu


_TARGET_TILE_BYTES = 4 << 20       # ~4 MiB per tile buffer
_VMEM_LIMIT_BYTES = 40 << 20       # 4 double-buffered tiles (16 MiB) + headroom
_SMALL_THRESHOLD = 512 * 1024      # elements; below this plain XLA add wins
_LANE_CANDIDATES = (512, 256, 128)  # lane-dense fold widths (multiples of 128)


def _add_one_kernel(x_ref, o_ref):
    # Elementwise add of 1 on the current (tile_rows, cols) tile (VPU op).
    o_ref[...] = x_ref[...] + jnp.asarray(1, dtype=o_ref.dtype)


def _round_up(n, m):
    return (n + m - 1) // m * m


def _pick_cols(total):
    """Largest lane-dense width that divides the element count (zero-copy fold)."""
    for c in _LANE_CANDIDATES:
        if total % c == 0:
            return c
    return None


def _pick_tiling(rows, cols, itemsize):
    """Choose (tile_rows, grid_len) such that:
       - the block is (sublane, 128)-aligned for the dtype,
       - each tile buffer is ~_TARGET_TILE_BYTES,
       - the 1-D grid has an even number (>= 2) of steps whenever possible so
         both v7x TensorCores stream HBM (harmless on single-TC v5e/v6e)."""
    sub = max(8, 32 // itemsize)       # 8 for f32, 16 for bf16, 32 for int8/fp8
    if rows <= sub:
        return rows, 1                 # single full-extent block
    cap = max(sub, (_TARGET_TILE_BYTES // (cols * itemsize)) // sub * sub)
    steps = pl.cdiv(rows, cap)
    steps = max(2, steps + (steps % 2))            # even, >= 2
    tile_rows = max(sub, _round_up(pl.cdiv(rows, steps), sub))
    tile_rows = min(tile_rows, cap, _round_up(rows, sub))
    return tile_rows, pl.cdiv(rows, tile_rows)


def tudui_forward(x, *, min_pallas_elements=_SMALL_THRESHOLD):
    """Pallas equivalent of Tudui.forward: returns x + 1, same shape/dtype."""
    x = jnp.asarray(x)
    orig_shape, orig_dtype = x.shape, x.dtype
    total = x.size
    itemsize = jnp.dtype(orig_dtype).itemsize

    # Small inputs (incl. the scalar of the reference usage): pallas_call
    # dispatch is pure overhead; fused XLA add is at least as fast.
    if total < max(1, min_pallas_elements):
        return (x + 1).astype(orig_dtype)

    cols = _pick_cols(total)
    if cols is None:
        # Element count not a multiple of 128: any Pallas-friendly relayout
        # (pad+slice or prefix+tail+concat) adds >= 1 extra full HBM round
        # trip on top of the kernel's own 2N bytes, so the fused XLA add
        # (exactly read-N + write-N) is the bandwidth-optimal choice here.
        return (x + 1).astype(orig_dtype)

    rows = total // cols
    x2d = x.reshape(rows, cols)        # contiguous fold -> free reshape, no copy

    tile_rows, grid_len = _pick_tiling(rows, cols, itemsize)

    out2d = pl.pallas_call(
        _add_one_kernel,
        out_shape=jax.ShapeDtypeStruct((rows, cols), orig_dtype),
        grid_spec=pl.GridSpec(
            grid=(grid_len,),
            in_specs=[pl.BlockSpec((tile_rows, cols), lambda i: (i, 0))],
            out_specs=pl.BlockSpec((tile_rows, cols), lambda i: (i, 0)),
        ),
        compiler_params=pltpu.CompilerParams(
            dimension_semantics=("parallel",),
            vmem_limit_bytes=_VMEM_LIMIT_BYTES,
        ),
        cost_estimate=pl.CostEstimate(
            flops=total,
            transcendentals=0,
            bytes_accessed=2 * total * itemsize,
        ),
    )(x2d)

    return out2d.reshape(orig_shape)


if __name__ == "__main__":
    key = jax.random.PRNGKey(0)

    # Scalar case — exactly the reference usage `tudui(torch.tensor(1.0))`.
    x_scalar = jnp.float32(1.0)
    out_scalar = jax.block_until_ready(tudui_forward(x_scalar))
    assert out_scalar.shape == ()
    assert jnp.allclose(out_scalar, 2.0)

    # Small module-sized tensor: force the Pallas path (2048 elems -> (4, 512)
    # full-extent block) to verify the kernel compiles and runs on TPU.
    x_small = jax.random.normal(key, (2, 4, 16, 16), dtype=jnp.float32)
    out_small = jax.block_until_ready(tudui_forward(x_small, min_pallas_elements=1))
    assert out_small.shape == x_small.shape
    assert out_small.dtype == x_small.dtype
    assert jnp.allclose(out_small, x_small + 1.0)

    # cols=128 fold with an even 2-step grid and a partial boundary block.
    x_mid = jax.random.normal(key, (3, 5, 7, 128), dtype=jnp.float32)
    out_mid = jax.block_until_ready(tudui_forward(x_mid, min_pallas_elements=1))
    assert jnp.allclose(out_mid, x_mid + 1.0)

    # Large tensor exceeds the bypass threshold -> default Pallas path,
    # lane-dense (2048, 512) fold, even 2-step grid.
    x_big = jax.random.normal(key, (4, 4, 256, 256), dtype=jnp.float32)
    out_big = jax.block_until_ready(tudui_forward(x_big))
    assert out_big.shape == x_big.shape
    assert jnp.allclose(out_big, x_big + 1.0)

    # Misaligned element count -> fused-XLA fallback (no extra HBM passes).
    x_odd = jax.random.normal(key, (3, 7, 33, 65), dtype=jnp.float32)
    out_odd = jax.block_until_ready(tudui_forward(x_odd))
    assert jnp.allclose(out_odd, x_odd + 1.0)

    print("KERNEL_OK")
</pallas_src>

<mosaic_0001>
module attributes {stable_mosaic.version = 11 : i64} {
  func.func @_add_one_kernel(%arg0: i32, %arg1: memref<4x512xf32, #tpu.memory_space<vmem>>, %arg2: memref<4x512xf32, #tpu.memory_space<vmem>>) attributes {dimension_semantics = [#tpu.dimension_semantics<parallel>], iteration_bounds = array<i64: 1>, scalar_prefetch = 0 : i64, scratch_operands = 0 : i64, tpu.core_type = #tpu.core_type<tc>, window_params = [{transform_indices = @transform_0, window_bounds = array<i64: 4, 512>}, {transform_indices = @transform_1, window_bounds = array<i64: 4, 512>}]} {
    %c0 = arith.constant 0 : index
    %c0_0 = arith.constant 0 : index
    %0 = vector.load %arg1[%c0, %c0_0] : memref<4x512xf32, #tpu.memory_space<vmem>>, vector<4x512xf32>
    %cst = arith.constant 1.000000e+00 : f32
    %1 = vector.broadcast %cst : f32 to vector<4x512xf32>
    %2 = arith.addf %0, %1 : vector<4x512xf32>
    %c0_1 = arith.constant 0 : index
    %c0_2 = arith.constant 0 : index
    %3 = vector.load %arg2[%c0_1, %c0_2] : memref<4x512xf32, #tpu.memory_space<vmem>>, vector<4x512xf32>
    tpu.vector_store %arg2[%c0_1, %c0_2], %2 {strides = array<i32>} : memref<4x512xf32, #tpu.memory_space<vmem>>, vector<4x512xf32>,
    return
  }
  func.func @transform_0(%arg0: i32) -> (i32, i32) {
    %c0_i32 = arith.constant 0 : i32
    %c0_i32_0 = arith.constant 0 : i32
    return %arg0, %c0_i32 : i32, i32
  }
  func.func @transform_1(%arg0: i32) -> (i32, i32) {
    %c0_i32 = arith.constant 0 : i32
    %c0_i32_0 = arith.constant 0 : i32
    return %arg0, %c0_i32 : i32, i32
  }
}

</mosaic_0001>

<llo_original>
// kernel: tpu_custom_call.1
$region0: #{tpu_custom_call.1}
  #allocation0 [shape = 'u32[]', space=smem, size = 0x4, offset = 0x4, fixed_abs, tag = 'smem constant byte address 0x4 - core index']
  #allocation1 [shape = 'u32[144,128]{1,0:T(1,128)}', space=vmem, size = 0x12000, scoped, tag = 'internal scratch']
  %s0 = inlined_call_operand.hbm [shape: f32[4,512], index: 0, kind: input, shape index: {}]
  %s1 = inlined_call_operand.hbm [shape: f32[4,512], index: 1, kind: output, shape index: {}]
  %s2 = sld [smem:[#allocation0]]
  $region18: #{tpu_custom_call.1} parent=0
    _
  %s4 = ssub.s32 1, %s2
  %s5 = scalar_select 0, %s4, %s2
  $region1: #{tpu_custom_call.1} parent=0
    #allocation2 [shape = 'u8[8192]{0}', space=vmem, size = 0x2000, scoped, tag = 'input window, operand 0, single buffered']
    #allocation3 [shape = 's32[1]{0}', space=sflag, size = 0x4, scoped, tag = 'scoped memory for tpu_custom_call.1']
    #allocation4 [shape = 's32[1]{0}', space=sflag, size = 0x4, scoped, tag = 'scoped memory for tpu_custom_call.1']
    #allocation5 [shape = 'u8[8192]{0}', space=vmem, size = 0x2000, scoped, tag = 'output window, operand 0, single buffered']
    %6 = vsyncpa [#allocation3], 0
    %7 = vsyncpa [#allocation4], 0
    // Predicated region
    $region2: #{tpu_custom_call.1} parent=1 // pred_check
      _
    $region3: #{tpu_custom_call.1} parent=1 // pred_check_branch
      %9 = sbr.rel (0) target = $region5
    $region4: #{tpu_custom_call.1} parent=1 // pred_region
      %s11 = ssub.s32 256, 256
      %12 = vsyncadd [#allocation3], %s11
      %s14 = sshll.u32 [#allocation2], 4
      %s15 = int_to_ptr.vmem [resolvable:$true] %s14
      %17 = dma.hbm_to_vmem [thread:$0]  %s0, 256, %s15, [#allocation3]
    $region5: #{tpu_custom_call.1} parent=1 // pred_fallthru
      _
    // Predicated region
    $region6: #{tpu_custom_call.1} parent=1 // pred_check
      _
    $region7: #{tpu_custom_call.1} parent=1 // pred_check_branch
      %19 = sbr.rel (0) target = $region9
    $region8: #{tpu_custom_call.1} parent=1 // pred_region
      %20 = dma.done [#allocation3], 256
    $region9: #{tpu_custom_call.1} parent=1 // pred_fallthru
      _
    %v21 = vld [vmem:[#allocation2] sm:$0xff]
    %v22 = vld [vmem:[#allocation2 + $0x8] sm:$0xff]
    %v23 = vadd.f32 %v21, 1.0
    %v24 = vadd.f32 %v22, 1.0
    %25 = vst [vmem:[#allocation5] sm:$0xff] %v23
    %26 = vst [vmem:[#allocation5 + $0x8] sm:$0xff] %v24
    // Predicated region
    $region10: #{tpu_custom_call.1} parent=1 // pred_check
      _
    $region11: #{tpu_custom_call.1} parent=1 // pred_check_branch
      %28 = sbr.rel (0) target = $region13
    $region12: #{tpu_custom_call.1} parent=1 // pred_region
      %s30 = ssub.s32 256, 256
      %31 = vsyncadd [#allocation4], %s30
      %s33 = sshll.u32 [#allocation5], 4
      %s34 = int_to_ptr.vmem [resolvable:$true] %s33
      %36 = dma.vmem_to_hbm [thread:$0]  %s34, 256, %s1, [#allocation4]
    $region13: #{tpu_custom_call.1} parent=1 // pred_fallthru
      _
    // Predicated region
    $region14: #{tpu_custom_call.1} parent=1 // pred_check
      _
    $region15: #{tpu_custom_call.1} parent=1 // pred_check_branch
      %38 = sbr.rel (0) target = $region17
    $region16: #{tpu_custom_call.1} parent=1 // pred_region
      %39 = dma.done [#allocation4], 256
    $region17: #{tpu_custom_call.1} parent=1 // pred_fallthru
      _
    %40 = vsyncpa [#allocation3], 1
    %41 = vsyncpa [#allocation4], 1

</llo_original>
